<compile_context>
chip_gen: v7x
topology: tpu7x:2x2x1
jax: 0.10.0
libtpu: 0.0.40
codegen_flags: <defaults>
</compile_context>

<pallas_src>
import functools
import math

import jax
import jax.numpy as jnp
from jax.experimental import pallas as pl
from jax.experimental.pallas import tpu as pltpu


# Caps tile_l so the per-tile unrolled vreg-add reduction (tile_l // 128 adds)
# stays small; 8192 already gives multi-MiB streamed blocks for realistic C.
_MAX_TILE_L = 64 * 128


def _vmem_capacity_bytes():
    """Physical VMEM of the current generation; conservative fallback = v7x."""
    try:
        return int(pltpu.get_tpu_info().vmem_capacity_bytes)
    except Exception:
        return 64 * 1024 * 1024


def _choose_tile_l(C, L_pad, itemsize, budget_bytes):
    """Largest 128-multiple dividing L_pad whose 2-input double-buffered
    streams fit `budget_bytes` (and the unroll cap)."""
    per_l = max(1, 2 * 2 * C * itemsize)          # 2 streamed inputs x 2 buffers
    max_l = max(128, (budget_bytes // per_l) // 128 * 128)
    max_l = min(max_l, _MAX_TILE_L, L_pad)
    best = 128
    for cand in range(128, max_l + 1, 128):
        if L_pad % cand == 0:
            best = cand
    return best


def _rf_train_loss_kernel(t_smem, x0_ref, eps_ref, w_ref, b_ref, v_ref,
                          out_ref, acc_ref, bt_ref, *, tile_l, l_true,
                          needs_mask, mxu_bf16):
    """One (batch, seq-split, seq-tile) step of the RF velocity training MSE."""
    b = pl.program_id(0)
    s = pl.program_id(1)
    l = pl.program_id(2)
    num_lps = pl.num_programs(2)

    t = t_smem[b]                                  # f32 scalar from SMEM

    @pl.when(l == 0)
    def _():
        acc_ref[...] = jnp.zeros_like(acc_ref)
        # Hoisted per-batch constant: bias + t * v (reused on every seq tile).
        bt_ref[...] = b_ref[...] + t * v_ref[...]

    x0 = x0_ref[0].astype(jnp.float32)             # (C, tile_l)
    eps = eps_ref[0].astype(jnp.float32)           # (C, tile_l)

    d = eps - x0                                   # VELOCITY target = noise - x_0
    x_t = x0 + t * d                               # == (1 - t) * x_0 + t * noise

    # Synthetic base-model forward_with_cfg(x_t, t): weight-stationary matmul.
    xd = x_t.astype(jnp.bfloat16) if mxu_bf16 else x_t
    pred = jnp.dot(w_ref[...], xd, preferred_element_type=jnp.float32)
    pred = pred + bt_ref[...]                      # (C,1) -> lane broadcast

    r = d - pred
    r2 = r * r
    if needs_mask:
        # Zero out padded columns so the masked MSE stays unbiased.
        col = ((s * num_lps + l) * tile_l
               + jax.lax.broadcasted_iota(jnp.int32, r2.shape, 1))
        r2 = jnp.where(col < l_true, r2, 0.0)

    # Lane-preserving partial reduction: fold aligned 128-lane slices with pure
    # VPU vreg adds into the resident (C, 128) f32 accumulator (no per-tile XLU
    # reduce, no sub-(8,128) scalar read-modify-write).
    part = r2[:, 0:128]
    for j in range(1, tile_l // 128):
        part = part + r2[:, j * 128:(j + 1) * 128]
    acc_ref[...] += part

    @pl.when(l == num_lps - 1)
    def _():
        # Single cross-lane/sublane reduce per (batch, split); lane-dense store.
        out_ref[...] = jnp.broadcast_to(jnp.sum(acc_ref[...]), out_ref.shape)


def rf_forward_losses(x0, noise, t, w, bias, v, tile_l=None, seq_splits=1,
                      stream_dtype=None):
    """JAX wrapper: pallas_call + final batch-mean (as in RectifiedFlow.forward).

    stream_dtype: optionally cast x0/noise once (e.g. jnp.bfloat16) to halve
    HBM traffic; the kernel upcasts to f32 internally.
    seq_splits: split the seq reduction into independent partial sums combined
    in the wrapper (gives v7x's 2nd TensorCore work when B is small/odd).
    """
    B, C, L = x0.shape
    if stream_dtype is not None:
        x0 = x0.astype(stream_dtype)
        noise = noise.astype(stream_dtype)
    itemsize = jnp.dtype(x0.dtype).itemsize

    # Pad L to a 128 multiple (lane-aligned DMA) and mask the residual columns.
    L_pad = ((L + 127) // 128) * 128
    needs_mask = L_pad != L
    if needs_mask:
        pad = ((0, 0), (0, 0), (0, L_pad - L))
        x0 = jnp.pad(x0, pad)
        noise = jnp.pad(noise, pad)

    vmem_cap = _vmem_capacity_bytes()
    if tile_l is None:
        tile_l = _choose_tile_l(C, L_pad, itemsize, budget_bytes=vmem_cap // 2)
    assert tile_l % 128 == 0 and L_pad % tile_l == 0, "tile_l must be a lane-aligned divisor of padded L"

    num_l_total = L_pad // tile_l
    seq_splits = max(1, math.gcd(int(seq_splits), num_l_total))
    num_lps = num_l_total // seq_splits

    block_bytes = C * tile_l * itemsize
    deep = (num_l_total >= 3) and (block_bytes <= 256 * 1024)
    n_buf = 3 if deep else 2

    mxu_bf16 = C >= 64
    w_in = w.astype(jnp.bfloat16 if mxu_bf16 else jnp.float32)   # (C, C), passed once
    b_col = bias.reshape(C, 1).astype(jnp.float32)
    v_col = v.reshape(C, 1).astype(jnp.float32)
    t_f32 = t.reshape(B).astype(jnp.float32)                     # SMEM scalar prefetch

    # Generation-aware VMEM limit: cover the streamed buffers + small residents,
    # capped at 80% of physical VMEM (48 MiB-ish on v7x, up to ~100 MiB on v6e).
    fixed = (2 * C * C * jnp.dtype(w_in.dtype).itemsize + 4 * 2 * C * 4
             + 2 * 8 * 128 * 4 + C * 128 * 4 + C * 4)
    need = 2 * n_buf * block_bytes + fixed
    vmem_limit = int(min(0.8 * vmem_cap, max(need + (8 << 20), 32 << 20)))

    kernel = functools.partial(
        _rf_train_loss_kernel, tile_l=tile_l, l_true=L,
        needs_mask=needs_mask, mxu_bf16=mxu_bf16)

    def build(use_deep):
        stream_kwargs = {"pipeline_mode": pl.Buffered(3)} if use_deep else {}
        x_idx = lambda b, s, l, t_s: (b, 0, s * num_lps + l)
        const0 = lambda b, s, l, t_s: (0, 0)
        grid_spec = pltpu.PrefetchScalarGridSpec(
            num_scalar_prefetch=1,
            grid=(B, seq_splits, num_lps),
            in_specs=[
                pl.BlockSpec((1, C, tile_l), x_idx, **stream_kwargs),   # x0
                pl.BlockSpec((1, C, tile_l), x_idx, **stream_kwargs),   # noise
                pl.BlockSpec((C, C), const0),                           # W
                pl.BlockSpec((C, 1), const0),                           # bias
                pl.BlockSpec((C, 1), const0),                           # v
            ],
            out_specs=pl.BlockSpec((1, 1, 8, 128),
                                   lambda b, s, l, t_s: (b, s, 0, 0)),
            scratch_shapes=[pltpu.VMEM((C, 128), jnp.float32),   # sum-of-squares acc
                            pltpu.VMEM((C, 1), jnp.float32)],    # bias + t*v
        )
        return pl.pallas_call(
            kernel,
            out_shape=jax.ShapeDtypeStruct((B, seq_splits, 8, 128), jnp.float32),
            grid_spec=grid_spec,
            compiler_params=pltpu.CompilerParams(
                dimension_semantics=("parallel", "parallel", "arbitrary"),
                vmem_limit_bytes=vmem_limit),
        )

    if deep:
        try:
            out = build(True)(t_f32, x0, noise, w_in, b_col, v_col)
        except Exception:
            # Safe fallback to the default depth-2 pipeline.
            out = build(False)(t_f32, x0, noise, w_in, b_col, v_col)
    else:
        out = build(False)(t_f32, x0, noise, w_in, b_col, v_col)

    inv_n = 1.0 / float(C * L)                     # true denominator (no pad bias)
    per_batch_ss = out[:, :, 0, 0].sum(axis=1)     # (B,) combine seq-split partials
    mse = per_batch_ss * inv_n                     # loss_weight == 1.0 (VELOCITY)
    # forward() returns the batch-mean of every loss term.
    return {"raw_mse": jnp.mean(mse), "mse": jnp.mean(mse), "loss": jnp.mean(mse)}


def rf_forward_losses_ref(x0, noise, t, w, bias, v):
    """Pure-JAX reference for correctness checking."""
    B, C, L = x0.shape
    t3 = t.reshape(B, 1, 1).astype(jnp.float32)
    x0f = x0.astype(jnp.float32)
    nf = noise.astype(jnp.float32)
    x_t = (1.0 - t3) * x0f + t3 * nf
    pred = (jnp.einsum("cd,bdl->bcl", w.astype(jnp.float32), x_t)
            + bias.reshape(1, C, 1) + t3 * v.reshape(1, C, 1))
    target = nf - x0f
    mse = jnp.mean((target - pred) ** 2, axis=(1, 2))
    m = jnp.mean(mse)
    return {"raw_mse": m, "mse": m, "loss": m}


def _check(tag, got, want, atol, rtol):
    got = jax.tree_util.tree_map(jax.block_until_ready, got)
    for k in want:
        assert jnp.allclose(got[k], want[k], atol=atol, rtol=rtol), (
            tag, k, got[k], want[k])


if __name__ == "__main__":
    key = jax.random.PRNGKey(0)
    B, C, L = 2, 4, 256   # batch, num_in_channel, seq_length (small demo shapes)
    keys = jax.random.split(key, 10)
    k_x, k_eps, k_t, k_w, k_b, k_v, k_x2, k_eps2, k_x3, k_eps3 = keys

    x0 = jax.random.normal(k_x, (B, C, L), jnp.float32)
    noise = jax.random.normal(k_eps, (B, C, L), jnp.float32)
    # logit-normal t sampler (loc=0.0, scale=1.0): sigmoid of standard normal
    t = jax.nn.sigmoid(jax.random.normal(k_t, (B,), jnp.float32))
    # deterministic synthetic base-model parameters
    w = 0.1 * jax.random.normal(k_w, (C, C), jnp.float32)
    bias = 0.1 * jax.random.normal(k_b, (C,), jnp.float32)
    v = 0.1 * jax.random.normal(k_v, (C,), jnp.float32)

    ref = rf_forward_losses_ref(x0, noise, t, w, bias, v)

    # 1) Auto tile: whole (1, C, L) slab resident -> one seq step per batch.
    _check("auto_tile", rf_forward_losses(x0, noise, t, w, bias, v),
           ref, 1e-5, 1e-5)

    # 2) Forced small tile + seq split across 2 (v7x 2nd-TC path), streamed acc.
    _check("split_stream",
           rf_forward_losses(x0, noise, t, w, bias, v, tile_l=128, seq_splits=2),
           ref, 1e-5, 1e-5)

    # 3) bf16 streaming of x0/noise (half the HBM bytes); compare against a
    #    reference fed the same bf16-quantized inputs.
    ref_bf16 = rf_forward_losses_ref(x0.astype(jnp.bfloat16),
                                     noise.astype(jnp.bfloat16), t, w, bias, v)
    _check("bf16_stream",
           rf_forward_losses(x0, noise, t, w, bias, v, stream_dtype=jnp.bfloat16),
           ref_bf16, 1e-4, 1e-4)

    # 4) Non-128-multiple L -> padded + masked path, true 1/(C*L) denominator.
    L2 = 200
    x0b = jax.random.normal(k_x2, (B, C, L2), jnp.float32)
    noiseb = jax.random.normal(k_eps2, (B, C, L2), jnp.float32)
    _check("masked_pad", rf_forward_losses(x0b, noiseb, t, w, bias, v),
           rf_forward_losses_ref(x0b, noiseb, t, w, bias, v), 1e-5, 1e-5)

    # 5) Many small seq tiles -> deep (Buffered(3)) pipeline path (with fallback).
    L3 = 512
    x0c = jax.random.normal(k_x3, (B, C, L3), jnp.float32)
    noisec = jax.random.normal(k_eps3, (B, C, L3), jnp.float32)
    _check("deep_pipeline",
           rf_forward_losses(x0c, noisec, t, w, bias, v, tile_l=128),
           rf_forward_losses_ref(x0c, noisec, t, w, bias, v), 1e-5, 1e-5)

    # TODO(synk): reverse_sample_progressive / reverse_sample_loop / sample
    # (Euler/ABM/scipy-RK45 ODE integration, tqdm, matplotlib) are host-side
    # sampling loops around the model call, not kernel math.
    print("KERNEL_OK")
</pallas_src>

<mosaic_0001>
module attributes {stable_mosaic.version = 11 : i64} {
  func.func @_rf_train_loss_kernel(%arg0: i32, %arg1: i32, %arg2: i32, %arg3: memref<2xf32, #tpu.memory_space<smem>>, %arg4: memref<1x4x256xf32, #tpu.memory_space<vmem>>, %arg5: memref<1x4x256xf32, #tpu.memory_space<vmem>>, %arg6: memref<4x4xf32, #tpu.memory_space<vmem>>, %arg7: memref<4x1xf32, #tpu.memory_space<vmem>>, %arg8: memref<4x1xf32, #tpu.memory_space<vmem>>, %arg9: memref<1x1x8x128xf32, #tpu.memory_space<vmem>>, %arg10: memref<4x128xf32, #tpu.memory_space<vmem>>, %arg11: memref<4x1xf32, #tpu.memory_space<vmem>>) attributes {dimension_semantics = [#tpu.dimension_semantics<parallel>, #tpu.dimension_semantics<parallel>, #tpu.dimension_semantics<arbitrary>], iteration_bounds = array<i64: 2, 1, 1>, scalar_prefetch = 1 : i64, scratch_operands = 2 : i64, tpu.core_type = #tpu.core_type<tc>, window_params = [{transform_indices = @transform_0, window_bounds = array<i64: 1, 4, 256>}, {transform_indices = @transform_1, window_bounds = array<i64: 1, 4, 256>}, {pipeline_mode = #tpu.pipeline_mode<synchronous>, transform_indices = @transform_2, window_bounds = array<i64: 4, 4>}, {pipeline_mode = #tpu.pipeline_mode<synchronous>, transform_indices = @transform_3, window_bounds = array<i64: 4, 1>}, {pipeline_mode = #tpu.pipeline_mode<synchronous>, transform_indices = @transform_4, window_bounds = array<i64: 4, 1>}, {transform_indices = @transform_5, window_bounds = array<i64: 1, 1, 8, 128>}]} {
    %0 = arith.index_cast %arg0 : i32 to index
    %1 = memref.load %arg3[%0] : memref<2xf32, #tpu.memory_space<smem>>
    %c0_i32 = arith.constant 0 : i32
    %2 = arith.cmpi eq, %arg2, %c0_i32 : i32
    %3 = arith.extui %2 : i1 to i32
    %c0_i32_0 = arith.constant 0 : i32
    %4 = arith.cmpi ne, %3, %c0_i32_0 : i32
    scf.if %4 {
      %cst_16 = arith.constant 0.000000e+00 : f32
      %29 = vector.broadcast %cst_16 : f32 to vector<4x128xf32>
      %c0_17 = arith.constant 0 : index
      %c0_18 = arith.constant 0 : index
      %30 = vector.load %arg10[%c0_17, %c0_18] : memref<4x128xf32, #tpu.memory_space<vmem>>, vector<4x128xf32>
      tpu.vector_store %arg10[%c0_17, %c0_18], %29 {strides = array<i32>} : memref<4x128xf32, #tpu.memory_space<vmem>>, vector<4x128xf32>,
      %c0_19 = arith.constant 0 : index
      %c0_20 = arith.constant 0 : index
      %31 = vector.load %arg7[%c0_19, %c0_20] : memref<4x1xf32, #tpu.memory_space<vmem>>, vector<4x1xf32>
      %c0_21 = arith.constant 0 : index
      %c0_22 = arith.constant 0 : index
      %32 = vector.load %arg8[%c0_21, %c0_22] : memref<4x1xf32, #tpu.memory_space<vmem>>, vector<4x1xf32>
      %33 = vector.broadcast %1 : f32 to vector<4x1xf32>
      %34 = arith.mulf %33, %32 : vector<4x1xf32>
      %35 = arith.addf %31, %34 : vector<4x1xf32>
      %c0_23 = arith.constant 0 : index
      %c0_24 = arith.constant 0 : index
      %36 = vector.load %arg11[%c0_23, %c0_24] : memref<4x1xf32, #tpu.memory_space<vmem>>, vector<4x1xf32>
      tpu.vector_store %arg11[%c0_23, %c0_24], %35 {strides = array<i32>} : memref<4x1xf32, #tpu.memory_space<vmem>>, vector<4x1xf32>,
    } else {
    }
    %c0 = arith.constant 0 : index
    %c0_1 = arith.constant 0 : index
    %c0_2 = arith.constant 0 : index
    %5 = vector.load %arg4[%c0, %c0_1, %c0_2] : memref<1x4x256xf32, #tpu.memory_space<vmem>>, vector<1x4x256xf32>
    %6 = vector.shape_cast %5 : vector<1x4x256xf32> to vector<4x256xf32>
    %c0_3 = arith.constant 0 : index
    %c0_4 = arith.constant 0 : index
    %c0_5 = arith.constant 0 : index
    %7 = vector.load %arg5[%c0_3, %c0_4, %c0_5] : memref<1x4x256xf32, #tpu.memory_space<vmem>>, vector<1x4x256xf32>
    %8 = vector.shape_cast %7 : vector<1x4x256xf32> to vector<4x256xf32>
    %9 = arith.subf %8, %6 : vector<4x256xf32>
    %10 = vector.broadcast %1 : f32 to vector<4x256xf32>
    %11 = arith.mulf %10, %9 : vector<4x256xf32>
    %12 = arith.addf %6, %11 : vector<4x256xf32>
    %c0_6 = arith.constant 0 : index
    %c0_7 = arith.constant 0 : index
    %13 = vector.load %arg6[%c0_6, %c0_7] : memref<4x4xf32, #tpu.memory_space<vmem>>, vector<4x4xf32>
    %cst = arith.constant dense<0.000000e+00> : vector<4x256xf32>
    %14 = tpu.matmul %13, %12, %cst {dimension_numbers = #tpu.dot_dimension_numbers<[1], [0], [0], [1], [0, 0, 1, 1], [], []>} : vector<4x4xf32>, vector<4x256xf32>, vector<4x256xf32> -> vector<4x256xf32>
    %c0_8 = arith.constant 0 : index
    %c0_9 = arith.constant 0 : index
    %15 = vector.load %arg11[%c0_8, %c0_9] : memref<4x1xf32, #tpu.memory_space<vmem>>, vector<4x1xf32>
    %16 = vector.broadcast %15 : vector<4x1xf32> to vector<4x256xf32>
    %17 = arith.addf %14, %16 : vector<4x256xf32>
    %18 = arith.subf %9, %17 : vector<4x256xf32>
    %19 = arith.mulf %18, %18 : vector<4x256xf32>
    %20 = vector.extract_strided_slice %19 {offsets = [0, 0], sizes = [4, 128], strides = [1, 1]} : vector<4x256xf32> to vector<4x128xf32>
    %21 = vector.extract_strided_slice %19 {offsets = [0, 128], sizes = [4, 128], strides = [1, 1]} : vector<4x256xf32> to vector<4x128xf32>
    %22 = arith.addf %20, %21 : vector<4x128xf32>
    %c0_10 = arith.constant 0 : index
    %c0_11 = arith.constant 0 : index
    %23 = vector.load %arg10[%c0_10, %c0_11] : memref<4x128xf32, #tpu.memory_space<vmem>>, vector<4x128xf32>
    %24 = arith.addf %23, %22 : vector<4x128xf32>
    %c0_12 = arith.constant 0 : index
    %c0_13 = arith.constant 0 : index
    %25 = vector.load %arg10[%c0_12, %c0_13] : memref<4x128xf32, #tpu.memory_space<vmem>>, vector<4x128xf32>
    tpu.vector_store %arg10[%c0_12, %c0_13], %24 {strides = array<i32>} : memref<4x128xf32, #tpu.memory_space<vmem>>, vector<4x128xf32>,
    %c0_i32_14 = arith.constant 0 : i32
    %26 = arith.cmpi eq, %arg2, %c0_i32_14 : i32
    %27 = arith.extui %26 : i1 to i32
    %c0_i32_15 = arith.constant 0 : i32
    %28 = arith.cmpi ne, %27, %c0_i32_15 : i32
    scf.if %28 {
      %c0_16 = arith.constant 0 : index
      %c0_17 = arith.constant 0 : index
      %29 = vector.load %arg10[%c0_16, %c0_17] : memref<4x128xf32, #tpu.memory_space<vmem>>, vector<4x128xf32>
      %30 = vector.shape_cast %29 : vector<4x128xf32> to vector<1x4x128xf32>
      %cst_18 = arith.constant dense<0.000000e+00> : vector<1xf32>
      %31 = vector.multi_reduction <add>, %30, %cst_18 [1, 2] : vector<1x4x128xf32> to vector<1xf32>
      %32 = vector.shape_cast %31 : vector<1xf32> to vector<1x1x1xf32>
      %33 = vector.extract %32[0, 0, 0] : f32 from vector<1x1x1xf32>
      %34 = vector.broadcast %33 : f32 to vector<1x1x8x128xf32>
      %c0_19 = arith.constant 0 : index
      %c0_20 = arith.constant 0 : index
      %c0_21 = arith.constant 0 : index
      %c0_22 = arith.constant 0 : index
      %35 = vector.load %arg9[%c0_19, %c0_20, %c0_21, %c0_22] : memref<1x1x8x128xf32, #tpu.memory_space<vmem>>, vector<1x1x8x128xf32>
      tpu.vector_store %arg9[%c0_19, %c0_20, %c0_21, %c0_22], %34 {strides = array<i32>} : memref<1x1x8x128xf32, #tpu.memory_space<vmem>>, vector<1x1x8x128xf32>,
    } else {
    }
    return
  }
  func.func @transform_0(%arg0: i32, %arg1: i32, %arg2: i32, %arg3: memref<2xf32, #tpu.memory_space<smem>>) -> (i32, i32, i32) {
    %c1_i32 = arith.constant 1 : i32
    %0 = arith.muli %arg1, %c1_i32 : i32
    %1 = arith.addi %0, %arg2 : i32
    %c0_i32 = arith.constant 0 : i32
    %c0_i32_0 = arith.constant 0 : i32
    return %arg0, %c0_i32, %1 : i32, i32, i32
  }
  func.func @transform_1(%arg0: i32, %arg1: i32, %arg2: i32, %arg3: memref<2xf32, #tpu.memory_space<smem>>) -> (i32, i32, i32) {
    %c1_i32 = arith.constant 1 : i32
    %0 = arith.muli %arg1, %c1_i32 : i32
    %1 = arith.addi %0, %arg2 : i32
    %c0_i32 = arith.constant 0 : i32
    %c0_i32_0 = arith.constant 0 : i32
    return %arg0, %c0_i32, %1 : i32, i32, i32
  }
  func.func @transform_2(%arg0: i32, %arg1: i32, %arg2: i32, %arg3: memref<2xf32, #tpu.memory_space<smem>>) -> (i32, i32) {
    %c0_i32 = arith.constant 0 : i32
    %c0_i32_0 = arith.constant 0 : i32
    %c0_i32_1 = arith.constant 0 : i32
    return %c0_i32, %c0_i32_0 : i32, i32
  }
  func.func @transform_3(%arg0: i32, %arg1: i32, %arg2: i32, %arg3: memref<2xf32, #tpu.memory_space<smem>>) -> (i32, i32) {
    %c0_i32 = arith.constant 0 : i32
    %c0_i32_0 = arith.constant 0 : i32
    %c0_i32_1 = arith.constant 0 : i32
    return %c0_i32, %c0_i32_0 : i32, i32
  }
  func.func @transform_4(%arg0: i32, %arg1: i32, %arg2: i32, %arg3: memref<2xf32, #tpu.memory_space<smem>>) -> (i32, i32) {
    %c0_i32 = arith.constant 0 : i32
    %c0_i32_0 = arith.constant 0 : i32
    %c0_i32_1 = arith.constant 0 : i32
    return %c0_i32, %c0_i32_0 : i32, i32
  }
  func.func @transform_5(%arg0: i32, %arg1: i32, %arg2: i32, %arg3: memref<2xf32, #tpu.memory_space<smem>>) -> (i32, i32, i32, i32) {
    %c0_i32 = arith.constant 0 : i32
    %c0_i32_0 = arith.constant 0 : i32
    %c0_i32_1 = arith.constant 0 : i32
    return %arg0, %arg1, %c0_i32, %c0_i32_0 : i32, i32, i32, i32
  }
}

</mosaic_0001>

<llo_original>
// kernel: tpu_custom_call.1
$region0: #{tpu_custom_call.1}
  #allocation0 [shape = 'u32[]', space=smem, size = 0x4, offset = 0x4, fixed_abs, tag = 'smem constant byte address 0x4 - core index']
  #allocation1 [shape = 'u32[144,128]{1,0:T(1,128)}', space=vmem, size = 0x12000, scoped, tag = 'internal scratch']
  #allocation2 [shape = 'f32[4,128]{1,0:T(4,128)}', space=vmem, size = 0x800, scoped, tag = 'scratch operand']
  #allocation3 [shape = 'f32[4,1]{1,0:T(4,128)}', space=vmem, size = 0x800, scoped, tag = 'scratch operand']
  #allocation4 [shape = 's32[1]{0}', space=sflag, size = 0x4, scoped, tag = 'scoped memory for tpu_custom_call.1']
  #allocation5 [shape = 'u8[512]{0}', space=smem, size = 0x200, scoped, tag = 'prefetched SMEM operand 0']
  %s0 = inlined_call_operand.vmem [shape: f32[2], index: 0, kind: input, shape index: {}]
  %s1 = inlined_call_operand.hbm [shape: f32[2,4,256], index: 1, kind: input, shape index: {}]
  %s2 = inlined_call_operand.vmem [shape: f32[2,4,256], index: 2, kind: input, shape index: {}]
  %s3 = inlined_call_operand.vmem [shape: f32[4,4], index: 3, kind: input, shape index: {}]
  %s4 = inlined_call_operand.vmem [shape: f32[4,1], index: 4, kind: input, shape index: {}]
  %s5 = inlined_call_operand.vmem [shape: f32[4,1], index: 5, kind: input, shape index: {}]
  %s6 = inlined_call_operand.hbm [shape: f32[2,1,8,128], index: 6, kind: output, shape index: {}]
  %s7 = sld [smem:[#allocation0]]
  $region65: #{tpu_custom_call.1} parent=0
    _
  %s9 = ssub.s32 1, %s7
  %s10 = scalar_select 0, %s9, %s7
  %s11 = sshll.u32 %s0, 4
  %s12 = int_to_ptr.vmem [resolvable:$true] %s11
  %14 = dma.vmem_to_smem %s12, 16, [#allocation5], [#allocation4]
  %15 = dma.done [#allocation4], 16
  %16 = sfence
  $region1: #{tpu_custom_call.1} parent=0
    #allocation6 [shape = 'u8[8192]{0}', space=vmem, size = 0x2000, scoped, tag = 'input window, operand 1']
    #allocation7 [shape = 's32[2]{0}', space=sflag, size = 0x8, scoped, tag = 'scoped memory for tpu_custom_call.1']
    #allocation8 [shape = 's32[2]{0}', space=sflag, size = 0x8, scoped, tag = 'scoped memory for tpu_custom_call.1']
    #allocation9 [shape = 'u8[8192]{0}', space=vmem, size = 0x2000, scoped, tag = 'output window, operand 0']
    %17 = vsyncpa [#allocation7], 0
    %s18 = scalar_lea.sflag [#allocation7], 1
    %19 = vsyncpa %s18, 0
    %20 = vsyncpa [#allocation8], 0
    %s21 = scalar_lea.sflag [#allocation8], 1
    %22 = vsyncpa %s21, 0
    loop: start=0, step=1, limit=4
    $region2: #{tpu_custom_call.1} parent=1 // loop_pre_header
      _
    $region3: #{tpu_custom_call.1} parent=1 // loop_header
      %s24 = sphi 0, %s28
      %p25 = scmp.ge.s32.totalorder %s24, 4
      %s31 = sphi 0, %s50
      %s32 = sphi 0, %s46
      %s33 = sphi 0, %s42
      %s34 = sphi 0, %s31
      %s35 = sphi 0, %s32
      %s36 = sphi 0, %s33
      %s37 = sphi 0, %s34
      %s38 = sphi 0, %s35
      %s39 = sphi 0, %s36
      %s57 = sphi 0, %s59
      %s60 = sphi 0, %s57
      %s61 = sphi 0, %s60
      %s77 = sphi 0, %s61
      %s87 = sphi 0, %s89
      %s90 = sphi 0, %s87
      %s91 = sphi 0, %s90
      %s107 = sphi 0, %s91
      %s111 = sphi 0, %s111
      %s113 = sphi 0, %s111
      %s114 = sphi 0, %s113
      %s128 = sphi 0, %s114
      %s132 = sphi 0, %s132
      %s134 = sphi 0, %s132
      %s135 = sphi 0, %s134
      %s149 = sphi 0, %s135
      %s153 = sphi 0, %s153
      %s155 = sphi 0, %s153
      %s156 = sphi 0, %s155
      %s170 = sphi 0, %s156
      %s178 = sphi 0, %s180
      %s181 = sphi 0, %s178
      %s182 = sphi 0, %s181
      %s198 = sphi 0, %s182
    $region4: #{tpu_custom_call.1} parent=1 // loop_header_branch
      %27 = sbr.rel (%p25) target = $region8
    $region5: #{tpu_custom_call.1} parent=1 // loop_body
      %s29 = ssub.s32 %s24, 1
      %s30 = ssub.s32 %s24, 2
      %s40 = sadd.s32 1, %s33
      %p41 = scmp.ge.s32.totalorder %s40, 1
      %s42 = scalar_select %p41, 0, %s40
      %s43 = sadd.s32 1, %s32
      %s44 = scalar_select %p41, %s43, %s32
      %p45 = scmp.ge.s32.totalorder %s44, 1
      %s46 = scalar_select %p45, 0, %s44
      %s47 = sadd.s32 1, %s31
      %s48 = scalar_select %p45, %s47, %s31
      %p49 = scmp.ge.s32.totalorder %s48, 2
      %s50 = scalar_select %p49, 0, %s48
      %s51 = sadd.s32 %s32, %s33
      %s52 = sadd.s32 %s46, %s42
      %s53 = ssub.s32 %s31, %s50
      %s54 = ssub.s32 %s51, %s52
      %s55 = sor.u32 %s53, %s54
      %p56 = scmp.eq.s32.totalorder %s55, 0
      %s58 = sadd.s32 %s57, 1
      %s59 = scalar_select %p56, %s57, %s58
      %p62 = pneg %p56
      %p63 = scmp.eq.s32.totalorder %s24, 1
      %p64 = por %p62, %p63
      %p65 = scmp.ne.s32.totalorder %s57, %s60
      %p66 = scmp.eq.s32.totalorder %s24, 0
      %p67 = por %p65, %p66
      %p68 = scmp.ne.s32.totalorder %s57, %s60
      %p69 = scmp.eq.s32.totalorder %s29, 1
      %p70 = por %p68, %p69
      %p71 = scmp.ne.s32.totalorder %s60, %s61
      %p72 = scmp.eq.s32.totalorder %s29, 0
      %p73 = por %p71, %p72
      %p74 = scmp.ne.s32.totalorder %s60, %s61
      %p75 = scmp.eq.s32.totalorder %s30, 1
      %p76 = por %p74, %p75
      %p78 = scmp.ne.s32.totalorder %s61, %s77
      %p79 = scmp.eq.s32.totalorder %s30, 0
      %p80 = por %p78, %p79
      %s81 = sadd.s32 %s32, %s33
      %s82 = sadd.s32 %s46, %s42
      %s83 = ssub.s32 %s31, %s50
      %s84 = ssub.s32 %s81, %s82
      %s85 = sor.u32 %s83, %s84
      %p86 = scmp.eq.s32.totalorder %s85, 0
      %s88 = sadd.s32 %s87, 1
      %s89 = scalar_select %p86, %s87, %s88
      %p92 = pneg %p86
      %p93 = scmp.eq.s32.totalorder %s24, 1
      %p94 = por %p92, %p93
      %p95 = scmp.ne.s32.totalorder %s87, %s90
      %p96 = scmp.eq.s32.totalorder %s24, 0
      %p97 = por %p95, %p96
      %p98 = scmp.ne.s32.totalorder %s87, %s90
      %p99 = scmp.eq.s32.totalorder %s29, 1
      %p100 = por %p98, %p99
      %p101 = scmp.ne.s32.totalorder %s90, %s91
      %p102 = scmp.eq.s32.totalorder %s29, 0
      %p103 = por %p101, %p102
      %p104 = scmp.ne.s32.totalorder %s90, %s91
      %p105 = scmp.eq.s32.totalorder %s30, 1
      %p106 = por %p104, %p105
      %p108 = scmp.ne.s32.totalorder %s91, %s107
      %p109 = scmp.eq.s32.totalorder %s30, 0
      %p110 = por %p108, %p109
      %s112 = sadd.s32 %s111, 1
      %p115 = scmp.eq.s32.totalorder %s24, 1
      %p116 = scmp.ne.s32.totalorder %s111, %s113
      %p117 = scmp.eq.s32.totalorder %s24, 0
      %p118 = por %p116, %p117
      %p119 = scmp.ne.s32.totalorder %s111, %s113
      %p120 = scmp.eq.s32.totalorder %s29, 1
      %p121 = por %p119, %p120
      %p122 = scmp.ne.s32.totalorder %s113, %s114
      %p123 = scmp.eq.s32.totalorder %s29, 0
      %p124 = por %p122, %p123
      %p125 = scmp.ne.s32.totalorder %s113, %s114
      %p126 = scmp.eq.s32.totalorder %s30, 1
      %p127 = por %p125, %p126
      %p129 = scmp.ne.s32.totalorder %s114, %s128
      %p130 = scmp.eq.s32.totalorder %s30, 0
      %p131 = por %p129, %p130
      %s133 = sadd.s32 %s132, 1
      %p136 = scmp.eq.s32.totalorder %s24, 1
      %p137 = scmp.ne.s32.totalorder %s132, %s134
      %p138 = scmp.eq.s32.totalorder %s24, 0
      %p139 = por %p137, %p138
      %p140 = scmp.ne.s32.totalorder %s132, %s134
      %p141 = scmp.eq.s32.totalorder %s29, 1
      %p142 = por %p140, %p141
      %p143 = scmp.ne.s32.totalorder %s134, %s135
      %p144 = scmp.eq.s32.totalorder %s29, 0
      %p145 = por %p143, %p144
      %p146 = scmp.ne.s32.totalorder %s134, %s135
      %p147 = scmp.eq.s32.totalorder %s30, 1
      %p148 = por %p146, %p147
      %p150 = scmp.ne.s32.totalorder %s135, %s149
      %p151 = scmp.eq.s32.totalorder %s30, 0
      %p152 = por %p150, %p151
      %s154 = sadd.s32 %s153, 1
      %p157 = scmp.eq.s32.totalorder %s24, 1
      %p158 = scmp.ne.s32.totalorder %s153, %s155
      %p159 = scmp.eq.s32.totalorder %s24, 0
      %p160 = por %p158, %p159
      %p161 = scmp.ne.s32.totalorder %s153, %s155
      %p162 = scmp.eq.s32.totalorder %s29, 1
      %p163 = por %p161, %p162
      %p164 = scmp.ne.s32.totalorder %s155, %s156
      %p165 = scmp.eq.s32.totalorder %s29, 0
      %p166 = por %p164, %p165
      %p167 = scmp.ne.s32.totalorder %s155, %s156
      %p168 = scmp.eq.s32.totalorder %s30, 1
      %p169 = por %p167, %p168
      %p171 = scmp.ne.s32.totalorder %s156, %s170
      %p172 = scmp.eq.s32.totalorder %s30, 0
      %p173 = por %p171, %p172
      %s174 = ssub.s32 %s31, %s50
      %s175 = ssub.s32 %s32, %s46
      %s176 = sor.u32 %s174, %s175
      %p177 = scmp.eq.s32.totalorder %s176, 0
      %s179 = sadd.s32 %s178, 1
      %s180 = scalar_select %p177, %s178, %s179
      %p183 = pneg %p177
      %p184 = scmp.eq.s32.totalorder %s24, 1
      %p185 = por %p183, %p184
      %p186 = scmp.ne.s32.totalorder %s178, %s181
      %p187 = scmp.eq.s32.totalorder %s24, 0
      %p188 = por %p186, %p187
      %p189 = scmp.ne.s32.totalorder %s178, %s181
      %p190 = scmp.eq.s32.totalorder %s29, 1
      %p191 = por %p189, %p190
      %p192 = scmp.ne.s32.totalorder %s181, %s182
      %p193 = scmp.eq.s32.totalorder %s29, 0
      %p194 = por %p192, %p193
      %p195 = scmp.ne.s32.totalorder %s181, %s182
      %p196 = scmp.eq.s32.totalorder %s30, 1
      %p197 = por %p195, %p196
      %p199 = scmp.ne.s32.totalorder %s182, %s198
      %p200 = scmp.eq.s32.totalorder %s30, 0
      %p201 = por %p199, %p200
      %p202 = scmp.le.s32.totalorder 1, %s24
      %p203 = scmp.lt.s32.totalorder %s24, 3
      %p204 = pnand %p202, %p203
      %p205 = pneg %p204
      // Predicated region
      $region9: #{tpu_custom_call.1} parent=5 // pred_check
        _
      $region10: #{tpu_custom_call.1} parent=5 // pred_check_branch
        %207 = sbr.rel (%p204) target = $region12
      $region11: #{tpu_custom_call.1} parent=5 // pred_region
        %s208 = ssub.s32 %s24, 1
        // Predicated region
        $region13: #{tpu_custom_call.1} parent=11 // pred_check
          %p209 = pneg %p124
        $region14: #{tpu_custom_call.1} parent=11 // pred_check_branch
          %211 = sbr.rel (%p209) target = $region16
        $region15: #{tpu_custom_call.1} parent=11 // pred_region
          _
        $region16: #{tpu_custom_call.1} parent=11 // pred_fallthru
          _
        // Predicated region
        $region17: #{tpu_custom_call.1} parent=11 // pred_check
          %p212 = pneg %p145
        $region18: #{tpu_custom_call.1} parent=11 // pred_check_branch
          %214 = sbr.rel (%p212) target = $region20
        $region19: #{tpu_custom_call.1} parent=11 // pred_region
          _
        $region20: #{tpu_custom_call.1} parent=11 // pred_fallthru
          _
        // Predicated region
        $region21: #{tpu_custom_call.1} parent=11 // pred_check
          %p215 = pneg %p166
        $region22: #{tpu_custom_call.1} parent=11 // pred_check_branch
          %217 = sbr.rel (%p215) target = $region24
        $region23: #{tpu_custom_call.1} parent=11 // pred_region
          _
        $region24: #{tpu_custom_call.1} parent=11 // pred_fallthru
          _
      $region12: #{tpu_custom_call.1} parent=5 // pred_fallthru
        _
      %p218 = scmp.lt.s32.totalorder %s24, 2
      // Predicated region
      $region25: #{tpu_custom_call.1} parent=5 // pred_check
        %p219 = pneg %p218
      $region26: #{tpu_custom_call.1} parent=5 // pred_check_branch
        %221 = sbr.rel (%p219) target = $region28
      $region27: #{tpu_custom_call.1} parent=5 // pred_region
        // Predicated region
        $region29: #{tpu_custom_call.1} parent=27 // pred_check
          %p222 = pneg %p67
        $region30: #{tpu_custom_call.1} parent=27 // pred_check_branch
          %224 = sbr.rel (%p222) target = $region32
        $region31: #{tpu_custom_call.1} parent=27 // pred_region
          %s225 = sand.u32 %s57, 1
          %s226 = scalar_lea.sflag [#allocation7], %s225
          %s227 = sand.u32 %s57, 1
          %s228 = smul.addr %s227, 8
          %s229 = scalar_lea.vmem [#allocation6], %s228
          %s230 = sadd.s32 %s32, %s33
          %s231 = smul.u32 2, %s230
          %s233 = ssub.s32 128, 128
          %234 = vsyncadd %s226, %s233
          %s235 = smul.addr %s31, 2
          %s236 = sadd.s32 %s231, %s235
          %s237 = smul.addr %s236, 64
          %s238 = scalar_lea.hbm %s1, %s237
          %s240 = sshll.u32 %s229, 4
          %s241 = int_to_ptr.vmem [resolvable:$true] %s240
          %243 = dma.hbm_to_vmem [thread:$0]  %s238, 128, %s241, %s226
        $region32: #{tpu_custom_call.1} parent=27 // pred_fallthru
          _
        // Predicated region
        $region33: #{tpu_custom_call.1} parent=27 // pred_check
          %p244 = pneg %p97
        $region34: #{tpu_custom_call.1} parent=27 // pred_check_branch
          %246 = sbr.rel (%p244) target = $region36
        $region35: #{tpu_custom_call.1} parent=27 // pred_region
          %s247 = sadd.s32 %s32, %s33
          %s248 = smul.u32 2, %s247
          %p249 = scmp.lt.s32.totalorder %s31, 1
          %s250 = scalar_select %p249, %s31, 1
          %p251 = scmp.lt.s32.totalorder %s248, 1
          %s252 = scalar_select %p251, %s248, 1
          %s253 = smul.addr %s250, 2
          %s254 = sadd.s32 %s252, %s253
          %s255 = smul.addr %s254, 4
          %s256 = scalar_lea.vmem %s2, %s255
          %s257 = sadd.s32 %s32, %s33
          %s258 = smul.u32 2, %s257
        $region36: #{tpu_custom_call.1} parent=27 // pred_fallthru
          _
      $region28: #{tpu_custom_call.1} parent=5 // pred_fallthru
        _
      %p259 = scmp.le.s32.totalorder 1, %s24
      %p260 = scmp.lt.s32.totalorder %s24, 3
      %p261 = pnand %p259, %p260
      %p262 = pneg %p261
      // Predicated region
      $region37: #{tpu_custom_call.1} parent=5 // pred_check
        _
      $region38: #{tpu_custom_call.1} parent=5 // pred_check_branch
        %264 = sbr.rel (%p261) target = $region40
      $region39: #{tpu_custom_call.1} parent=5 // pred_region
        %s265 = ssub.s32 %s24, 1
        %s266 = sand.u32 %s60, 1
        %s267 = scalar_lea.sflag [#allocation7], %s266
        %s268 = sand.u32 %s60, 1
        %s269 = smul.addr %s268, 8
        %s270 = scalar_lea.vmem [#allocation6], %s269
        // Predicated region
        $region41: #{tpu_custom_call.1} parent=39 // pred_check
          %p271 = pneg %p73
        $region42: #{tpu_custom_call.1} parent=39 // pred_check_branch
          %273 = sbr.rel (%p271) target = $region44
        $region43: #{tpu_custom_call.1} parent=39 // pred_region
          %274 = dma.done %s267, 128
        $region44: #{tpu_custom_call.1} parent=39 // pred_fallthru
          _
        %s275 = sand.u32 %s60, 1
        %s276 = scalar_lea.sflag [#allocation7], %s275
        %s277 = sand.u32 %s60, 1
        %s278 = smul.addr %s277, 8
        %s279 = scalar_lea.vmem [#allocation6], %s278
        %p280 = pneg %p73
        %p281 = pneg %p70
        %s282 = sadd.s32 %s35, %s36
        %s283 = smul.u32 2, %s282
        %p284 = scmp.lt.s32.totalorder %s34, 1
        %s285 = scalar_select %p284, %s34, 1
        %p286 = scmp.lt.s32.totalorder %s283, 1
        %s287 = scalar_select %p286, %s283, 1
        %s288 = smul.addr %s285, 2
        %s289 = sadd.s32 %s287, %s288
        %s290 = smul.addr %s289, 4
        %s291 = scalar_lea.vmem %s2, %s290
        %p292 = pneg %p103
        %p293 = pneg %p100
        %p294 = pneg %p124
        %p295 = pneg %p121
        %p296 = pneg %p145
        %p297 = pneg %p142
        %p298 = pneg %p166
        %p299 = pneg %p163
        %p300 = pneg %p194
        %p301 = pneg %p191
        %s302 = sand.u32 %s181, 1
        %s303 = scalar_lea.sflag [#allocation8], %s302
        %s304 = sand.u32 %s181, 1
        %s305 = smul.addr %s304, 8
        %s306 = scalar_lea.vmem [#allocation9], %s305
        %s307 = sadd.s32 %s35, %s36
        %s308 = smul.u32 2, %s307
        %s309 = sadd.s32 %s35, %s36
        %s310 = smul.u32 2, %s309
        %p311 = scmp.lt.s32.totalorder %s34, 1
        %s312 = scalar_select %p311, %s34, 1
        %p313 = scmp.lt.s32.totalorder %s310, 1
        %s314 = scalar_select %p313, %s310, 1
        %s315 = smul.addr %s312, 2
        %s316 = sadd.s32 %s314, %s315
        %s317 = smul.addr %s316, 4
        %s318 = scalar_lea.vmem %s2, %s317
        %s319 = sadd.s32 %s35, %s36
        %s320 = smul.u32 2, %s319
        %s321 = sld [smem:[#allocation5 + %s34]]
        %p322 = scmp.eq.s32.totalorder %s36, 0
        // Predicated region
        $region45: #{tpu_custom_call.1} parent=39 // pred_check
          %p323 = pneg %p322
        $region46: #{tpu_custom_call.1} parent=39 // pred_check_branch
          %325 = sbr.rel (%p323) target = $region48
        $region47: #{tpu_custom_call.1} parent=39 // pred_region
          %326 = vst [vmem:[#allocation2] sm:$0xf] 0.0
          %v327 = vld [vmem:[%s4] sm:$0xf]
          %v328 = vld [vmem:[%s5] sm:$0xf]
          %v329 = vstv %s321
          %v330 = vmul.f32 %v329, %v328
          %v331 = vadd.f32 %v327, %v330
          %vm332 = vcmask 3072
          %333 = vst.msk [vmem:[#allocation3] sm:$0xf] %vm332, %v331
        $region48: #{tpu_custom_call.1} parent=39 // pred_fallthru
          _
        %v334 = vld [vmem:[%s270] sm:$0xff]
        %v335 = vld [vmem:[%s318] sm:$0xff]
        %v336 = vsub.f32 %v335, %v334
        %v337 = vstv %s321
        %v338 = vmul.f32 %v337, %v336
        %v339 = vadd.f32 %v334, %v338
        %v340 = vld [vmem:[%s3] sm:$0xf]
        %v341 = vld [vmem:[#allocation3] sm:$0xf]
        %343 = vset.pattern.permute.xlu0 0
        %344 = vperm.xlu0 %343, %v341
        %v345 = vpop.permute.xlu0 %344
        %v348 = vcombine.high %v339, %v339
        %vm349 = vcmask 31744
        %v351 = vsel %vm349, %v340, 0
        %vm353 = vcmask 1043456
        %v354 = vsel %vm353, %v339, 0
        %v356 = vsel %vm353, %v348, 0
        %358 = vmatprep.subr.mxu0 %v356
        %359 = vmatpush1.msra.mxu0 %v354
        %360 = vmatprep.subr.mxu0 0.0
        %361 = vmatpush1.msra.mxu0 0.0
        %362 = vmatprep.subr.mxu0 0.0
        %363 = vmatpush1.msra.mxu0 0.0
        %364 = vmatprep.subr.mxu0 0.0
        %365 = vmatpush1.msra.mxu0 0.0
        %366 = vmatprep.subr.mxu0 0.0
        %367 = vmatpush1.msra.mxu0 0.0
        %368 = vmatprep.subr.mxu0 0.0
        %369 = vmatpush1.msra.mxu0 0.0
        %370 = vmatprep.subr.mxu0 0.0
        %371 = vmatpush1.msra.mxu0 0.0
        %372 = vmatprep.subr.mxu0 0.0
        %373 = vmatpush1.msra.mxu0 0.0
        %374 = vmatprep.subr.mxu0 0.0
        %375 = vmatpush1.msra.mxu0 0.0
        %376 = vmatprep.subr.mxu0 0.0
        %377 = vmatpush1.msra.mxu0 0.0
        %378 = vmatprep.subr.mxu0 0.0
        %379 = vmatpush1.msra.mxu0 0.0
        %380 = vmatprep.subr.mxu0 0.0
        %381 = vmatpush1.msra.mxu0 0.0
        %382 = vmatprep.subr.mxu0 0.0
        %383 = vmatpush1.msra.mxu0 0.0
        %384 = vmatprep.subr.mxu0 0.0
        %385 = vmatpush1.msra.mxu0 0.0
        %386 = vmatprep.subr.mxu0 0.0
        %387 = vmatpush1.msra.mxu0 0.0
        %388 = vmatprep.subr.mxu0 0.0
        %389 = vmatpush1.msra.mxu0 0.0
        %390 = vmatprep.subr.mxu0 0.0
        %391 = vmatpush1.msra.mxu0 0.0
        %392 = vmatprep.subr.mxu0 0.0
        %393 = vmatpush1.msra.mxu0 0.0
        %394 = vmatprep.subr.mxu0 0.0
        %395 = vmatpush1.msra.mxu0 0.0
        %396 = vmatprep.subr.mxu0 0.0
        %397 = vmatpush1.msra.mxu0 0.0
        %398 = vmatprep.subr.mxu0 0.0
        %399 = vmatpush1.msra.mxu0 0.0
        %400 = vmatprep.subr.mxu0 0.0
        %401 = vmatpush1.msra.mxu0 0.0
        %402 = vmatprep.subr.mxu0 0.0
        %403 = vmatpush1.msra.mxu0 0.0
        %404 = vmatprep.subr.mxu0 0.0
        %405 = vmatpush1.msra.mxu0 0.0
        %406 = vmatprep.subr.mxu0 0.0
        %407 = vmatpush1.msra.mxu0 0.0
        %408 = vmatprep.subr.mxu0 0.0
        %409 = vmatpush1.msra.mxu0 0.0
        %410 = vmatprep.subr.mxu0 0.0
        %411 = vmatpush1.msra.mxu0 0.0
        %412 = vmatprep.subr.mxu0 0.0
        %413 = vmatpush1.msra.mxu0 0.0
        %414 = vmatprep.subr.mxu0 0.0
        %415 = vmatpush1.msra.mxu0 0.0
        %416 = vmatprep.subr.mxu0 0.0
        %417 = vmatpush1.msra.mxu0 0.0
        %418 = vmatprep.subr.mxu0 0.0
        %419 = vmatpush1.msra.mxu0 0.0
        %420 = vmatprep.subr.mxu0 0.0
        %421 = vmatpush1.msra.mxu0 0.0
        %422 = vmatprep.mubr.f32.mxu0 0.0
        %423 = vmatmul.mubr.f32.gmra.mrb[0].mxu0 %v351
        %v424 = vpop.f32.mrb[0].mxu0
        %v425 = vadd.f32 %v345, %v424
        %v426 = vpop.f32.mrb[0].mxu0
        %v427 = vadd.f32 %v345, %v426
        %428 = vdwg.mxu0
        %v431 = vcombine.low %v425, %v427
        %v433 = vsub.f32 %v336, %v431
        %v434 = vmul.f32 %v433, %v433
        %v436 = vrot.slane %v434, 4
        %v438 = vadd.f32 %v434, %v436
        %v439 = vld [vmem:[#allocation2] sm:$0xf]
        %v440 = vadd.f32 %v439, %v438
        %441 = vst [vmem:[#allocation2] sm:$0xf] %v440
        // Predicated region
        $region49: #{tpu_custom_call.1} parent=39 // pred_check
          %p442 = pneg %p322
        $region50: #{tpu_custom_call.1} parent=39 // pred_check_branch
          %444 = sbr.rel (%p442) target = $region52
        $region51: #{tpu_custom_call.1} parent=39 // pred_region
          %v445 = vld [vmem:[#allocation2] sm:$0xf]
          %v446 = vsel %vm353, %v445, 0.0
          %447 = vadd.xlane.f32.xlu0 %v446
          %v448 = vpop.xlane.xlu0 %447
          %v449 = vrot.slane %v448, 4
          %v450 = vadd.f32 %v448, %v449
          %v451 = vrot.slane %v450, 2
          %v452 = vadd.f32 %v450, %v451
          %v453 = vrot.slane %v452, 1
          %v454 = vadd.f32 %v452, %v453
          %s455 = vtos %v454
          %v456 = vstv %s455
          %457 = vst [vmem:[%s306] sm:$0xff] %v456
        $region52: #{tpu_custom_call.1} parent=39 // pred_fallthru
          _
        %s458 = sand.u32 %s181, 1
        %s459 = scalar_lea.sflag [#allocation8], %s458
        %s460 = sand.u32 %s181, 1
        %s461 = smul.addr %s460, 8
        %s462 = scalar_lea.vmem [#allocation9], %s461
        // Predicated region
        $region53: #{tpu_custom_call.1} parent=39 // pred_check
          %p463 = pneg %p191
        $region54: #{tpu_custom_call.1} parent=39 // pred_check_branch
          %465 = sbr.rel (%p463) target = $region56
        $region55: #{tpu_custom_call.1} parent=39 // pred_region
          %s467 = ssub.s32 128, 128
          %468 = vsyncadd %s459, %s467
          %s469 = sadd.s32 %s35, %s34
          %s470 = smul.addr %s469, 128
          %s471 = scalar_lea.hbm %s6, %s470
          %s473 = sshll.u32 %s462, 4
          %s474 = int_to_ptr.vmem [resolvable:$true] %s473
          %476 = dma.vmem_to_hbm [thread:$0]  %s474, 128, %s471, %s459
        $region56: #{tpu_custom_call.1} parent=39 // pred_fallthru
          _
      $region40: #{tpu_custom_call.1} parent=5 // pred_fallthru
        _
      %p477 = scmp.le.s32.totalorder 2, %s24
      // Predicated region
      $region57: #{tpu_custom_call.1} parent=5 // pred_check
        %p478 = pneg %p477
      $region58: #{tpu_custom_call.1} parent=5 // pred_check_branch
        %480 = sbr.rel (%p478) target = $region60
      $region59: #{tpu_custom_call.1} parent=5 // pred_region
        %s481 = ssub.s32 %s24, 2
        // Predicated region
        $region61: #{tpu_custom_call.1} parent=59 // pred_check
          %p482 = pneg %p197
        $region62: #{tpu_custom_call.1} parent=59 // pred_check_branch
          %484 = sbr.rel (%p482) target = $region64
        $region63: #{tpu_custom_call.1} parent=59 // pred_region
          %s485 = sand.u32 %s182, 1
          %s486 = scalar_lea.sflag [#allocation8], %s485
          %s487 = sand.u32 %s182, 1
          %s488 = smul.addr %s487, 8
          %s489 = scalar_lea.vmem [#allocation9], %s488
          %490 = dma.done %s486, 128
        $region64: #{tpu_custom_call.1} parent=59 // pred_fallthru
          _
      $region60: #{tpu_custom_call.1} parent=5 // pred_fallthru
        _
    $region6: #{tpu_custom_call.1} parent=1 // loop_footer
      %s28 = sadd.s32 1, %s24
    $region7: #{tpu_custom_call.1} parent=1 // loop_footer_branch
      %23 = sbr.rel target = $region3
    $region8: #{tpu_custom_call.1} parent=1 // loop_exit
      _
    %491 = vsyncpa [#allocation7], 1
    %s492 = scalar_lea.sflag [#allocation7], 1
    %493 = vsyncpa %s492, 1
    %494 = vsyncpa [#allocation8], 1
    %s495 = scalar_lea.sflag [#allocation8], 1
    %496 = vsyncpa %s495, 1

</llo_original>
